<compile_context>
chip_gen: v7x
topology: tpu7x:2x2x1
jax: 0.10.0
libtpu: 0.0.40
codegen_flags: <defaults>
</compile_context>

<pallas_src>
import jax
import jax.numpy as jnp
from jax import lax
from jax.experimental import pallas as pl
from jax.experimental.pallas import tpu as pltpu

PAD_TOKEN_ID = 0
_LANE = 128
_SUBLANE = 8
_T_CHUNK = 16          # LSTM steps per grid iteration of the recurrence kernel
_TILE_TARGET = 512     # target matmul tile edge (M and N)


def _round_up(x, m):
    return ((x + m - 1) // m) * m


def _vmem_limit_bytes(requested):
    """Clamp a VMEM request to 75% of physical per-core VMEM (headroom for
    Mosaic internal scratch), with a 32 MiB floor so small kernels keep the
    compiler's default pipelining freedom."""
    try:
        cap = int(pltpu.get_tpu_info().vmem_capacity_bytes)
    except Exception:
        cap = 64 << 20                       # conservative: v7x per-TensorCore VMEM
    if cap <= (32 << 20):
        cap = 64 << 20
    hi = (cap * 3) // 4
    return int(min(max(int(requested), 32 << 20), hi))


# ---------------------------------------------------------------------------
# Generic tiled matmul: out[M, N] = a[M, K] @ w[K, N]   (bf16 in, f32/bf16 out)
# ---------------------------------------------------------------------------
def _matmul_kernel(a_ref, w_ref, o_ref):
    o_ref[...] = jnp.dot(a_ref[...], w_ref[...],
                         preferred_element_type=jnp.float32).astype(o_ref.dtype)


def _choose_tile(dim, align, target):
    """Pick a large tile: whole dim if it fits in one tile, else the largest
    divisor in [target/2, target]; otherwise pad the dim up to a multiple of
    `target` rather than shrinking the tile."""
    d = _round_up(dim, align)
    if d <= target:
        return d, d
    for cand in range(target, target // 2 - 1, -align):
        if d % cand == 0:
            return cand, d
    return target, _round_up(d, target)


def _tiled_matmul(a, w, out_dtype=jnp.float32):
    M, K = a.shape
    K2, N = w.shape
    assert K == K2
    mb, Mp = _choose_tile(M, _SUBLANE, _TILE_TARGET)
    nb, Np = _choose_tile(N, _LANE, _TILE_TARGET)
    if Mp != M:
        a = jnp.pad(a, ((0, Mp - M), (0, 0)))
    if Np != N:
        w = jnp.pad(w, ((0, 0), (0, Np - N)))
    m_blocks, n_blocks = Mp // mb, Np // nb

    out_itemsize = jnp.dtype(out_dtype).itemsize
    # Extra HBM traffic of each grid ordering: the operand whose block index
    # changes along the inner grid axis is re-streamed once per outer block.
    extra_m_outer = (m_blocks - 1) * K * Np * w.dtype.itemsize   # weights re-read
    extra_n_outer = (n_blocks - 1) * Mp * K * a.dtype.itemsize   # activations re-read
    if extra_n_outer <= extra_m_outer:
        grid = (n_blocks, m_blocks)            # weights resident per column sweep
        a_map = lambda j, i: (i, 0)
        w_map = lambda j, i: (0, j)
        o_map = lambda j, i: (i, j)
    else:
        grid = (m_blocks, n_blocks)            # activations resident per row sweep
        a_map = lambda i, j: (i, 0)
        w_map = lambda i, j: (0, j)
        o_map = lambda i, j: (i, j)

    tile_bytes = (mb * K * a.dtype.itemsize + K * nb * w.dtype.itemsize
                  + mb * nb * out_itemsize)
    vmem_limit = _vmem_limit_bytes(2 * tile_bytes + (4 << 20))   # double-buffered + headroom

    flops = 2 * Mp * K * Np
    bytes_accessed = int(Mp * K * a.dtype.itemsize + K * Np * w.dtype.itemsize
                         + Mp * Np * out_itemsize)
    out = pl.pallas_call(
        _matmul_kernel,
        out_shape=jax.ShapeDtypeStruct((Mp, Np), out_dtype),
        grid_spec=pltpu.PrefetchScalarGridSpec(
            num_scalar_prefetch=0,
            grid=grid,
            in_specs=[pl.BlockSpec((mb, K), a_map),
                      pl.BlockSpec((K, nb), w_map)],
            out_specs=pl.BlockSpec((mb, nb), o_map),
        ),
        compiler_params=pltpu.CompilerParams(
            dimension_semantics=("parallel", "parallel"),
            vmem_limit_bytes=vmem_limit),
        cost_estimate=pl.CostEstimate(flops=flops, transcendentals=0,
                                      bytes_accessed=bytes_accessed),
    )(a, w)
    if Mp != M or Np != N:
        out = out[:M, :N]
    return out


# ---------------------------------------------------------------------------
# LSTM recurrence kernel (grid = (batch_block, time_chunk), state in scratch)
# ---------------------------------------------------------------------------
def _lstm_recurrence_kernel(gx_ref, zg_ref, c0_ref, h0_ref, w_hh_ref, len_ref,
                            hs_ref, h_sc, c_sc):
    t_chunk, _, hp = hs_ref.shape             # hp is a multiple of 128

    @pl.when(pl.program_id(1) == 0)
    def _init():
        h_sc[...] = h0_ref[...]
        c_sc[...] = c0_ref[...]

    t_base = pl.program_id(1) * t_chunk

    def step(tt, carry):
        gates = (gx_ref[tt].astype(jnp.float32) + zg_ref[...]
                 + jnp.dot(h_sc[...].astype(jnp.bfloat16), w_hh_ref[...],
                           preferred_element_type=jnp.float32))      # (Bblk, 4*hp) f32
        # 128-aligned gate slices; PyTorch gate order i, f, g, o.
        i_g = jax.nn.sigmoid(gates[:, 0 * hp:1 * hp])
        f_g = jax.nn.sigmoid(gates[:, 1 * hp:2 * hp])
        g_g = jnp.tanh(gates[:, 2 * hp:3 * hp])
        o_g = jax.nn.sigmoid(gates[:, 3 * hp:4 * hp])
        c_new = f_g * c_sc[...] + i_g * g_g
        h_new = o_g * jnp.tanh(c_new)
        c_sc[...] = c_new
        h_sc[...] = h_new
        valid = (t_base + tt) < len_ref[...]                         # (Bblk, 1) broadcast
        hs_ref[tt] = jnp.where(valid, h_new, 0.0).astype(hs_ref.dtype)
        return carry

    # Short fixed trip count: fully unrolled but with loop-bounded live ranges.
    lax.fori_loop(0, t_chunk, step, 0, unroll=True)


def _lstm_recurrence(gx, zg, c0, h0, w_hh_t, lens, t_chunk, batch_block=None):
    tp, bp, g = gx.shape
    hp = g // 4
    # Optional batch-parallel axis: on multi-TensorCore parts (v7x) a large
    # padded batch can be split into >=2 blocks so both cores run the serial
    # loop.  Default: one block (the recurrence is MXU-weight-push bound at
    # small batch, so splitting a small batch buys nothing on 1-TC chips).
    b_blk = bp if batch_block is None else batch_block
    assert bp % b_blk == 0 and b_blk % _SUBLANE == 0
    n_b = bp // b_blk
    n_t = tp // t_chunk

    # VMEM request: double-buffered streamed blocks + single-buffered invariants
    # + scratch, with headroom; clamped per-generation inside _vmem_limit_bytes.
    streamed = 2 * (t_chunk * b_blk * g * 2 + t_chunk * b_blk * hp * 2)   # gx, hs (bf16)
    resident = (b_blk * g * 4 + 2 * b_blk * hp * 4                        # zg, c0, h0 (f32)
                + hp * g * 2 + b_blk * _LANE * 4)                         # w_hh^T, lens
    scratch = 2 * b_blk * hp * 4
    vmem_limit = _vmem_limit_bytes(2 * (streamed + resident + scratch) + (4 << 20))

    def build_call(single_buffer_invariants):
        if single_buffer_invariants:
            inv = lambda shape, idx: pl.BlockSpec(shape, idx,
                                                  pipeline_mode=pl.Buffered(1))
        else:
            inv = lambda shape, idx: pl.BlockSpec(shape, idx)
        return pl.pallas_call(
            _lstm_recurrence_kernel,
            out_shape=jax.ShapeDtypeStruct((tp, bp, hp), jnp.bfloat16),
            grid_spec=pltpu.PrefetchScalarGridSpec(
                num_scalar_prefetch=0,
                grid=(n_b, n_t),
                in_specs=[
                    pl.BlockSpec((t_chunk, b_blk, g), lambda b, i: (i, b, 0)),  # gates_x
                    inv((b_blk, g), lambda b, i: (b, 0)),                       # zg (+bias)
                    inv((b_blk, hp), lambda b, i: (b, 0)),                      # c0
                    inv((b_blk, hp), lambda b, i: (b, 0)),                      # h0
                    inv((hp, g), lambda b, i: (0, 0)),                          # w_hh^T
                    inv((b_blk, 1), lambda b, i: (b, 0)),                       # lengths-1
                ],
                out_specs=pl.BlockSpec((t_chunk, b_blk, hp), lambda b, i: (i, b, 0)),
                scratch_shapes=[pltpu.VMEM((b_blk, hp), jnp.float32),   # h state
                                pltpu.VMEM((b_blk, hp), jnp.float32)],  # c state
            ),
            compiler_params=pltpu.CompilerParams(
                dimension_semantics=("parallel", "arbitrary"),
                vmem_limit_bytes=vmem_limit),
        )

    args = (gx, zg, c0, h0, w_hh_t, lens)
    try:
        return build_call(True)(*args)
    except Exception:
        # Fallback path if single-buffered pipeline_mode is rejected by this
        # jax/Mosaic build: default double-buffering (correctness identical).
        return build_call(False)(*args)


# ---------------------------------------------------------------------------
# Wrapper: LSTMDecoder.decode(z, x) forward pass
# ---------------------------------------------------------------------------
def lstm_decoder_forward(params, z, tokenised_text, lengths, t_max, *,
                         batch_block=None):
    embed_tbl = params["embed"]               # (V, E)
    w_lat = params["w_latent"]                # (H, L)
    w_ih = params["w_ih"]                     # (4H, E + L)
    w_hh = params["w_hh"]                     # (4H, H)
    bias = params["b_ih"] + params["b_hh"]    # (4H,)
    w_pred = params["w_pred"]                 # (V, H)

    B, _ = tokenised_text.shape
    L = z.shape[1]
    H = w_hh.shape[1]
    V = w_pred.shape[0]
    E = embed_tbl.shape[1]

    if t_max <= 0:                             # all sequences of length 1
        return jnp.zeros((B, 0, V), jnp.float32)

    # TODO(synk): round HP to 256 on v6e/v7x (256x256 MXU) when H is large; kept
    # at 128 here since generation cannot be detected portably and 128 is
    # correct (and optimal for v5e) everywhere.
    HP = _round_up(H, _LANE)                  # lane-aligned hidden/gate slices
    G = 4 * HP
    VP = _round_up(V, _TILE_TARGET) if V > _TILE_TARGET else _round_up(V, _LANE)
    BP = _round_up(B, _SUBLANE)               # fill vreg sublanes / MXU rows
    TP = _round_up(t_max, _T_CHUNK)

    # --- zero-pad weights; the 4H axis is padded per gate so i,f,g,o stay aligned ---
    def pad_gates(wm):                        # (4H, X) -> (4*HP, X)
        x = wm.shape[1]
        return jnp.pad(wm.reshape(4, H, x),
                       ((0, 0), (0, HP - H), (0, 0))).reshape(G, x)

    w_ih_e = pad_gates(w_ih[:, :E])                                    # (G, E)
    w_ih_z = pad_gates(w_ih[:, E:])                                    # (G, L)
    w_hh_p = jnp.pad(pad_gates(w_hh), ((0, 0), (0, HP - H)))           # (G, HP)
    b_p = jnp.pad(bias.reshape(4, H), ((0, 0), (0, HP - H))).reshape(G)
    w_lat_p = jnp.pad(w_lat, ((0, HP - H), (0, 0)))                    # (HP, L)
    w_pred_p = jnp.pad(w_pred, ((0, VP - V), (0, HP - H)))             # (VP, HP)

    # --- glue: embedding lookup (dropout_in == identity in eval), pad B/T ---
    word_embed = embed_tbl[tokenised_text][:, :t_max, :]               # (B, T, E)
    emb = jnp.pad(word_embed, ((0, BP - B), (0, TP - t_max), (0, 0)))
    emb_t = jnp.transpose(emb, (1, 0, 2)).astype(jnp.bfloat16)         # (TP, BP, E)

    z_p = jnp.pad(z, ((0, BP - B), (0, 0))).astype(jnp.float32)        # (BP, L)
    lens_p = jnp.pad((lengths - 1).astype(jnp.int32), (0, BP - B))[:, None]

    # 1) time-parallel input projection (bf16 MXU matmul, bf16 output stream)
    gx2 = _tiled_matmul(emb_t.reshape(TP * BP, E),
                        jnp.transpose(w_ih_e).astype(jnp.bfloat16),
                        out_dtype=jnp.bfloat16)                        # (TP*BP, G) bf16
    gx = gx2.reshape(TP, BP, G)

    # Precompute the time-invariant pieces once in f32 (tiny XLA ops):
    zg = z_p @ jnp.transpose(w_ih_z) + b_p[None, :]                    # (BP, G) f32
    c0 = z_p @ jnp.transpose(w_lat_p)                                  # (BP, HP) f32
    h0 = jnp.tanh(c0)

    # 2) sequential recurrence: only h @ w_hh^T per step; h streamed out masked
    hs = _lstm_recurrence(gx, zg.astype(jnp.float32), c0.astype(jnp.float32),
                          h0.astype(jnp.float32),
                          jnp.transpose(w_hh_p).astype(jnp.bfloat16),
                          lens_p, _T_CHUNK,
                          batch_block=batch_block)                     # (TP, BP, HP) bf16

    # 3) time-parallel vocab projection (dropout_out == identity in eval).
    #    hs (small, bf16) is reordered to (B, T, H) *before* the matmul so the
    #    large f32 logits tensor is produced directly in its final layout.
    hs_bt = jnp.transpose(hs, (1, 0, 2)).reshape(BP * TP, HP)
    logits2 = _tiled_matmul(hs_bt,
                            jnp.transpose(w_pred_p).astype(jnp.bfloat16))  # (BP*TP, VP) f32
    logits = logits2.reshape(BP, TP, VP)[:B, :t_max, :V]
    return logits                                                      # (B, T, V)


# ---------------------------------------------------------------------------
# Pure-JAX f32 reference (mirrors PyTorch packed-LSTM semantics)
# ---------------------------------------------------------------------------
def _reference_forward(params, z, tokenised_text, lengths, t_max):
    embed_tbl = params["embed"]
    w_lat = params["w_latent"]
    w_ih = params["w_ih"]
    w_hh = params["w_hh"]
    b = params["b_ih"] + params["b_hh"]
    w_pred = params["w_pred"]

    B, S = tokenised_text.shape
    L = z.shape[1]

    word_embed = embed_tbl[tokenised_text]
    xz = jnp.concatenate(
        [word_embed, jnp.broadcast_to(z[:, None, :], (B, S, L))], axis=-1)
    xz_t = jnp.transpose(xz[:, :t_max, :], (1, 0, 2))

    c0 = z @ w_lat.T
    h0 = jnp.tanh(c0)

    def step(carry, x_t):
        h, c = carry
        gates = x_t @ w_ih.T + h @ w_hh.T + b
        i_g, f_g, g_g, o_g = jnp.split(gates, 4, axis=-1)
        c_new = jax.nn.sigmoid(f_g) * c + jax.nn.sigmoid(i_g) * jnp.tanh(g_g)
        h_new = jax.nn.sigmoid(o_g) * jnp.tanh(c_new)
        return (h_new, c_new), h_new

    _, hs = lax.scan(step, (h0, c0), xz_t)                             # (T, B, H)
    logits = hs @ w_pred.T
    t_idx = jnp.arange(t_max)[:, None, None]
    valid = t_idx < (lengths - 1)[None, :, None]
    logits = jnp.where(valid, logits, 0.0)
    return jnp.transpose(logits, (1, 0, 2))


def _init_params(key, vocab_size, emb_dim, latent_dim, hidden_dim):
    ks = jax.random.split(key, 7)
    din = emb_dim + latent_dim
    embed = jax.random.uniform(ks[0], (vocab_size, emb_dim), jnp.float32, -0.1, 0.1)
    embed = embed.at[PAD_TOKEN_ID].set(0.0)   # nn.Embedding padding_idx row
    return {
        "embed": embed,
        "w_latent": jax.random.uniform(ks[1], (hidden_dim, latent_dim), jnp.float32, -0.1, 0.1),
        "w_ih": jax.random.uniform(ks[2], (4 * hidden_dim, din), jnp.float32, -0.01, 0.01),
        "w_hh": jax.random.uniform(ks[3], (4 * hidden_dim, hidden_dim), jnp.float32, -0.01, 0.01),
        "b_ih": jax.random.uniform(ks[4], (4 * hidden_dim,), jnp.float32, -0.01, 0.01),
        "b_hh": jax.random.uniform(ks[5], (4 * hidden_dim,), jnp.float32, -0.01, 0.01),
        "w_pred": jax.random.uniform(ks[6], (vocab_size, hidden_dim), jnp.float32, -0.1, 0.1),
    }


if __name__ == "__main__":
    # Small shapes consistent with the module's forward.
    B, S = 2, 8
    latent_dim, emb_dim, hidden_dim, vocab_size = 16, 32, 32, 64

    key = jax.random.PRNGKey(0)
    k_par, k_z, k_tok = jax.random.split(key, 3)

    params = _init_params(k_par, vocab_size, emb_dim, latent_dim, hidden_dim)

    z = jax.random.normal(k_z, (B, latent_dim), jnp.float32)
    tokens = jax.random.randint(k_tok, (B, S), 1, vocab_size, dtype=jnp.int32)
    lengths_py = [8, 6]                           # per-sample sequence lengths
    lengths = jnp.array(lengths_py, dtype=jnp.int32)
    # Zero out padding tokens past each length (as a tokenizer would).
    pos = jnp.arange(S)[None, :]
    tokens = jnp.where(pos < lengths[:, None], tokens, PAD_TOKEN_ID)

    t_max = max(lengths_py) - 1                   # pad_packed_sequence max len

    out = lstm_decoder_forward(params, z, tokens, lengths, t_max)
    out = jax.block_until_ready(out)

    ref = _reference_forward(params, z, tokens, lengths, t_max)
    assert out.shape == (B, t_max, vocab_size)
    # bf16 matmul operands (f32 accumulation) -> relaxed tolerance vs f32 reference.
    assert jnp.allclose(out, ref, rtol=2e-2, atol=2e-2), "mismatch vs JAX reference"

    print("KERNEL_OK")
</pallas_src>

<mosaic_0001>
module attributes {stable_mosaic.version = 11 : i64} {
  func.func @_matmul_kernel(%arg0: i32, %arg1: i32, %arg2: memref<128x32xbf16, #tpu.memory_space<vmem>>, %arg3: memref<32x512xbf16, #tpu.memory_space<vmem>>, %arg4: memref<128x512xbf16, #tpu.memory_space<vmem>>) attributes {dimension_semantics = [#tpu.dimension_semantics<parallel>, #tpu.dimension_semantics<parallel>], iteration_bounds = array<i64: 1, 1>, scalar_prefetch = 0 : i64, scratch_operands = 0 : i64, tpu.core_type = #tpu.core_type<tc>, window_params = [{transform_indices = @transform_0, window_bounds = array<i64: 128, 32>}, {transform_indices = @transform_1, window_bounds = array<i64: 32, 512>}, {transform_indices = @transform_2, window_bounds = array<i64: 128, 512>}]} {
    %c0 = arith.constant 0 : index
    %c0_0 = arith.constant 0 : index
    %0 = vector.load %arg2[%c0, %c0_0] : memref<128x32xbf16, #tpu.memory_space<vmem>>, vector<128x32xbf16>
    %c0_1 = arith.constant 0 : index
    %c0_2 = arith.constant 0 : index
    %1 = vector.load %arg3[%c0_1, %c0_2] : memref<32x512xbf16, #tpu.memory_space<vmem>>, vector<32x512xbf16>
    %cst = arith.constant dense<0.000000e+00> : vector<128x512xf32>
    %2 = tpu.matmul %0, %1, %cst {dimension_numbers = #tpu.dot_dimension_numbers<[1], [0], [0], [1], [0, 0, 1, 1], [], []>} : vector<128x32xbf16>, vector<32x512xbf16>, vector<128x512xf32> -> vector<128x512xf32>
    %3 = arith.truncf %2 : vector<128x512xf32> to vector<128x512xbf16>
    %c0_3 = arith.constant 0 : index
    %c0_4 = arith.constant 0 : index
    %4 = vector.load %arg4[%c0_3, %c0_4] : memref<128x512xbf16, #tpu.memory_space<vmem>>, vector<128x512xbf16>
    tpu.vector_store %arg4[%c0_3, %c0_4], %3 {strides = array<i32>} : memref<128x512xbf16, #tpu.memory_space<vmem>>, vector<128x512xbf16>,
    return
  }
  func.func @transform_0(%arg0: i32, %arg1: i32) -> (i32, i32) {
    %c0_i32 = arith.constant 0 : i32
    %c0_i32_0 = arith.constant 0 : i32
    return %arg1, %c0_i32 : i32, i32
  }
  func.func @transform_1(%arg0: i32, %arg1: i32) -> (i32, i32) {
    %c0_i32 = arith.constant 0 : i32
    %c0_i32_0 = arith.constant 0 : i32
    return %c0_i32, %arg0 : i32, i32
  }
  func.func @transform_2(%arg0: i32, %arg1: i32) -> (i32, i32) {
    %c0_i32 = arith.constant 0 : i32
    return %arg1, %arg0 : i32, i32
  }
}

</mosaic_0001>

<llo_original>
// kernel: tpu_custom_call.1
$region0: #{tpu_custom_call.1}
  #allocation0 [shape = 'u32[]', space=smem, size = 0x4, offset = 0x4, fixed_abs, tag = 'smem constant byte address 0x4 - core index']
  #allocation1 [shape = 'u32[144,128]{1,0:T(1,128)}', space=vmem, size = 0x12000, scoped, tag = 'internal scratch']
  %s0 = inlined_call_operand.vmem [shape: bf16[128,32], index: 0, kind: input, shape index: {}]
  %s1 = inlined_call_operand.vmem [shape: bf16[32,512], index: 1, kind: input, shape index: {}]
  %s2 = inlined_call_operand.hbm [shape: bf16[128,512], index: 2, kind: output, shape index: {}]
  %s3 = sld [smem:[#allocation0]]
  $region18: #{tpu_custom_call.1} parent=0
    _
  %s5 = ssub.s32 1, %s3
  %s6 = scalar_select 0, %s5, %s3
  $region1: #{tpu_custom_call.1} parent=0
    #allocation2 [shape = 'u8[131072]{0}', space=vmem, size = 0x20000, scoped, tag = 'output window, operand 0, single buffered']
    #allocation3 [shape = 's32[1]{0}', space=sflag, size = 0x4, scoped, tag = 'scoped memory for tpu_custom_call.1']
    %7 = vsyncpa [#allocation3], 0
    // Predicated region
    $region2: #{tpu_custom_call.1} parent=1 // pred_check
      _
    $region3: #{tpu_custom_call.1} parent=1 // pred_check_branch
      %9 = sbr.rel (0) target = $region5
    $region4: #{tpu_custom_call.1} parent=1 // pred_region
      _
    $region5: #{tpu_custom_call.1} parent=1 // pred_fallthru
      _
    // Predicated region
    $region6: #{tpu_custom_call.1} parent=1 // pred_check
      _
    $region7: #{tpu_custom_call.1} parent=1 // pred_check_branch
      %11 = sbr.rel (0) target = $region9
    $region8: #{tpu_custom_call.1} parent=1 // pred_region
      _
    $region9: #{tpu_custom_call.1} parent=1 // pred_fallthru
      _
    %v13 = vld [vmem:[%s0] sm:$0xf]
    %v14 = vld [vmem:[%s0 + $0x4] sm:$0xf]
    %v15 = vld [vmem:[%s0 + $0x8] sm:$0xf]
    %v16 = vld [vmem:[%s0 + $0xc] sm:$0xf]
    %v17 = vld [vmem:[%s0 + $0x10] sm:$0xf]
    %v18 = vld [vmem:[%s0 + $0x14] sm:$0xf]
    %v19 = vld [vmem:[%s0 + $0x18] sm:$0xf]
    %v20 = vld [vmem:[%s0 + $0x1c] sm:$0xf]
    %v21 = vld [vmem:[%s0 + $0x20] sm:$0xf]
    %v22 = vld [vmem:[%s0 + $0x24] sm:$0xf]
    %v23 = vld [vmem:[%s0 + $0x28] sm:$0xf]
    %v24 = vld [vmem:[%s0 + $0x2c] sm:$0xf]
    %v25 = vld [vmem:[%s0 + $0x30] sm:$0xf]
    %v26 = vld [vmem:[%s0 + $0x34] sm:$0xf]
    %v27 = vld [vmem:[%s0 + $0x38] sm:$0xf]
    %v28 = vld [vmem:[%s0 + $0x3c] sm:$0xf]
    %v29 = vld [vmem:[%s1] sm:$0xff]
    %v30 = vld [vmem:[%s1 + $0x8] sm:$0xff]
    %v31 = vld [vmem:[%s1 + $0x10] sm:$0xff]
    %v32 = vld [vmem:[%s1 + $0x18] sm:$0xff]
    %v33 = vld [vmem:[%s1 + $0x20] sm:$0xff]
    %v34 = vld [vmem:[%s1 + $0x28] sm:$0xff]
    %v35 = vld [vmem:[%s1 + $0x30] sm:$0xff]
    %v36 = vld [vmem:[%s1 + $0x38] sm:$0xff]
    %v53 = vunpack.c.l.b16 %v13
    %v54 = vunpack.c.l.b16 %v14
    %v55 = vunpack.c.l.b16 %v15
    %v56 = vunpack.c.l.b16 %v16
    %v57 = vunpack.c.l.b16 %v17
    %v58 = vunpack.c.l.b16 %v18
    %v59 = vunpack.c.l.b16 %v19
    %v60 = vunpack.c.l.b16 %v20
    %v61 = vunpack.c.l.b16 %v21
    %v62 = vunpack.c.l.b16 %v22
    %v63 = vunpack.c.l.b16 %v23
    %v64 = vunpack.c.l.b16 %v24
    %v65 = vunpack.c.l.b16 %v25
    %v66 = vunpack.c.l.b16 %v26
    %v67 = vunpack.c.l.b16 %v27
    %v68 = vunpack.c.l.b16 %v28
    %v69 = vpack.c.b16 %v54, %v53
    %v70 = vpack.c.b16 %v56, %v55
    %v71 = vpack.c.b16 %v58, %v57
    %v72 = vpack.c.b16 %v60, %v59
    %v73 = vpack.c.b16 %v62, %v61
    %v74 = vpack.c.b16 %v64, %v63
    %v75 = vpack.c.b16 %v66, %v65
    %v76 = vpack.c.b16 %v68, %v67
    %v85 = vunpack.c.l.b16 %v29
    %v86 = vunpack.c.h.b16 %v29
    %v87 = vunpack.c.l.b16 %v30
    %v88 = vunpack.c.h.b16 %v30
    %v89 = vunpack.c.l.b16 %v31
    %v90 = vunpack.c.h.b16 %v31
    %v91 = vunpack.c.l.b16 %v32
    %v92 = vunpack.c.h.b16 %v32
    %v93 = vunpack.c.l.b16 %v33
    %v94 = vunpack.c.h.b16 %v33
    %v95 = vunpack.c.l.b16 %v34
    %v96 = vunpack.c.h.b16 %v34
    %v97 = vunpack.c.l.b16 %v35
    %v98 = vunpack.c.h.b16 %v35
    %v99 = vunpack.c.l.b16 %v36
    %v100 = vunpack.c.h.b16 %v36
    %v101 = vpack.c.b16 %v89, %v85
    %v102 = vpack.c.b16 %v90, %v86
    %v103 = vpack.c.b16 %v91, %v87
    %v104 = vpack.c.b16 %v92, %v88
    %v105 = vpack.c.b16 %v97, %v93
    %v106 = vpack.c.b16 %v98, %v94
    %v107 = vpack.c.b16 %v99, %v95
    %v108 = vpack.c.b16 %v100, %v96
    %vm117 = vcmask 261120
    %v119 = vsel %vm117, %v69, 0
    %v122 = vsel %vm117, %v70, 0
    %v125 = vsel %vm117, %v71, 0
    %v128 = vsel %vm117, %v72, 0
    %v131 = vsel %vm117, %v73, 0
    %v134 = vsel %vm117, %v74, 0
    %v137 = vsel %vm117, %v75, 0
    %v140 = vsel %vm117, %v76, 0
    %142 = vmatprep.subr.bf16.mxu0 %v102
    %143 = vmatpush1.bf16.msra.mxu0 %v101
    %144 = vmatprep.subr.bf16.mxu0 %v106
    %145 = vmatpush1.bf16.msra.mxu0 %v105
    %146 = vmatprep.subr.bf16.mxu0 0
    %147 = vmatpush1.bf16.msra.mxu0 0
    %148 = vmatprep.subr.bf16.mxu0 0
    %149 = vmatpush1.bf16.msra.mxu0 0
    %150 = vmatprep.subr.bf16.mxu0 0
    %151 = vmatpush1.bf16.msra.mxu0 0
    %152 = vmatprep.subr.bf16.mxu0 0
    %153 = vmatpush1.bf16.msra.mxu0 0
    %154 = vmatprep.subr.bf16.mxu0 0
    %155 = vmatpush1.bf16.msra.mxu0 0
    %156 = vmatprep.subr.bf16.mxu0 0
    %157 = vmatpush1.bf16.msra.mxu0 0
    %158 = vmatprep.subr.bf16.mxu0 0
    %159 = vmatpush1.bf16.msra.mxu0 0
    %160 = vmatprep.subr.bf16.mxu0 0
    %161 = vmatpush1.bf16.msra.mxu0 0
    %162 = vmatprep.subr.bf16.mxu0 0
    %163 = vmatpush1.bf16.msra.mxu0 0
    %164 = vmatprep.subr.bf16.mxu0 0
    %165 = vmatpush1.bf16.msra.mxu0 0
    %166 = vmatprep.subr.bf16.mxu0 0
    %167 = vmatpush1.bf16.msra.mxu0 0
    %168 = vmatprep.subr.bf16.mxu0 0
    %169 = vmatpush1.bf16.msra.mxu0 0
    %170 = vmatprep.subr.bf16.mxu0 0
    %171 = vmatpush1.bf16.msra.mxu0 0
    %172 = vmatprep.subr.bf16.mxu0 0
    %173 = vmatpush1.bf16.msra.mxu0 0
    %174 = vmatprep.mubr.bf16.mxu0 0
    %175 = vmatmul.mubr.bf16.gmra.mrb[0].mxu0 %v119
    %v176 = vpop.f32.mrb[0].mxu0
    %v177 = vadd.f32 0.0, %v176
    %v178 = vpop.f32.mrb[0].mxu0
    %v179 = vadd.f32 0.0, %v178
    %v180 = vpop.f32.mrb[0].mxu0
    %v181 = vadd.f32 0.0, %v180
    %v182 = vpop.f32.mrb[0].mxu0
    %v183 = vadd.f32 0.0, %v182
    %184 = vmatprep.mubr.bf16.mxu0 0
    %185 = vmatmul.mubr.bf16.gmra.mrb[0].mxu0 %v122
    %v186 = vpop.f32.mrb[0].mxu0
    %v187 = vadd.f32 0.0, %v186
    %v188 = vpop.f32.mrb[0].mxu0
    %v189 = vadd.f32 0.0, %v188
    %v190 = vpop.f32.mrb[0].mxu0
    %v191 = vadd.f32 0.0, %v190
    %v192 = vpop.f32.mrb[0].mxu0
    %v193 = vadd.f32 0.0, %v192
    %194 = vmatprep.mubr.bf16.mxu0 0
    %195 = vmatmul.mubr.bf16.gmra.mrb[0].mxu0 %v125
    %v196 = vpop.f32.mrb[0].mxu0
    %v197 = vadd.f32 0.0, %v196
    %v198 = vpop.f32.mrb[0].mxu0
    %v199 = vadd.f32 0.0, %v198
    %v200 = vpop.f32.mrb[0].mxu0
    %v201 = vadd.f32 0.0, %v200
    %v202 = vpop.f32.mrb[0].mxu0
    %v203 = vadd.f32 0.0, %v202
    %204 = vmatprep.mubr.bf16.mxu0 0
    %205 = vmatmul.mubr.bf16.gmra.mrb[0].mxu0 %v128
    %v206 = vpop.f32.mrb[0].mxu0
    %v207 = vadd.f32 0.0, %v206
    %v208 = vpop.f32.mrb[0].mxu0
    %v209 = vadd.f32 0.0, %v208
    %v210 = vpop.f32.mrb[0].mxu0
    %v211 = vadd.f32 0.0, %v210
    %v212 = vpop.f32.mrb[0].mxu0
    %v213 = vadd.f32 0.0, %v212
    %214 = vmatprep.mubr.bf16.mxu0 0
    %215 = vmatmul.mubr.bf16.gmra.mrb[0].mxu0 %v131
    %v216 = vpop.f32.mrb[0].mxu0
    %v217 = vadd.f32 0.0, %v216
    %v218 = vpop.f32.mrb[0].mxu0
    %v219 = vadd.f32 0.0, %v218
    %v220 = vpop.f32.mrb[0].mxu0
    %v221 = vadd.f32 0.0, %v220
    %v222 = vpop.f32.mrb[0].mxu0
    %v223 = vadd.f32 0.0, %v222
    %224 = vmatprep.mubr.bf16.mxu0 0
    %225 = vmatmul.mubr.bf16.gmra.mrb[0].mxu0 %v134
    %v226 = vpop.f32.mrb[0].mxu0
    %v227 = vadd.f32 0.0, %v226
    %v228 = vpop.f32.mrb[0].mxu0
    %v229 = vadd.f32 0.0, %v228
    %v230 = vpop.f32.mrb[0].mxu0
    %v231 = vadd.f32 0.0, %v230
    %v232 = vpop.f32.mrb[0].mxu0
    %v233 = vadd.f32 0.0, %v232
    %234 = vmatprep.mubr.bf16.mxu0 0
    %235 = vmatmul.mubr.bf16.gmra.mrb[0].mxu0 %v137
    %v236 = vpop.f32.mrb[0].mxu0
    %v237 = vadd.f32 0.0, %v236
    %v238 = vpop.f32.mrb[0].mxu0
    %v239 = vadd.f32 0.0, %v238
    %v240 = vpop.f32.mrb[0].mxu0
    %v241 = vadd.f32 0.0, %v240
    %v242 = vpop.f32.mrb[0].mxu0
    %v243 = vadd.f32 0.0, %v242
    %244 = vmatprep.mubr.bf16.mxu0 0
    %245 = vmatmul.mubr.bf16.gmra.mrb[0].mxu0 %v140
    %v246 = vpop.f32.mrb[0].mxu0
    %v247 = vadd.f32 0.0, %v246
    %v248 = vpop.f32.mrb[0].mxu0
    %v249 = vadd.f32 0.0, %v248
    %v250 = vpop.f32.mrb[0].mxu0
    %v251 = vadd.f32 0.0, %v250
    %v252 = vpop.f32.mrb[0].mxu0
    %v253 = vadd.f32 0.0, %v252
    %254 = vdwg.mxu0
    %255 = vmatprep.subr.bf16.mxu0 %v104
    %256 = vmatpush1.bf16.msra.mxu0 %v103
    %257 = vmatprep.subr.bf16.mxu0 %v108
    %258 = vmatpush1.bf16.msra.mxu0 %v107
    %259 = vmatprep.subr.bf16.mxu0 0
    %260 = vmatpush1.bf16.msra.mxu0 0
    %261 = vmatprep.subr.bf16.mxu0 0
    %262 = vmatpush1.bf16.msra.mxu0 0
    %263 = vmatprep.subr.bf16.mxu0 0
    %264 = vmatpush1.bf16.msra.mxu0 0
    %265 = vmatprep.subr.bf16.mxu0 0
    %266 = vmatpush1.bf16.msra.mxu0 0
    %267 = vmatprep.subr.bf16.mxu0 0
    %268 = vmatpush1.bf16.msra.mxu0 0
    %269 = vmatprep.subr.bf16.mxu0 0
    %270 = vmatpush1.bf16.msra.mxu0 0
    %271 = vmatprep.subr.bf16.mxu0 0
    %272 = vmatpush1.bf16.msra.mxu0 0
    %273 = vmatprep.subr.bf16.mxu0 0
    %274 = vmatpush1.bf16.msra.mxu0 0
    %275 = vmatprep.subr.bf16.mxu0 0
    %276 = vmatpush1.bf16.msra.mxu0 0
    %277 = vmatprep.subr.bf16.mxu0 0
    %278 = vmatpush1.bf16.msra.mxu0 0
    %279 = vmatprep.subr.bf16.mxu0 0
    %280 = vmatpush1.bf16.msra.mxu0 0
    %281 = vmatprep.subr.bf16.mxu0 0
    %282 = vmatpush1.bf16.msra.mxu0 0
    %283 = vmatprep.subr.bf16.mxu0 0
    %284 = vmatpush1.bf16.msra.mxu0 0
    %285 = vmatprep.subr.bf16.mxu0 0
    %286 = vmatpush1.bf16.msra.mxu0 0
    %287 = vmatprep.mubr.bf16.mxu0 0
    %288 = vmatmul.mubr.bf16.gmra.mrb[0].mxu0 %v119
    %v289 = vpop.f32.mrb[0].mxu0
    %v290 = vadd.f32 0.0, %v289
    %v291 = vpop.f32.mrb[0].mxu0
    %v292 = vadd.f32 0.0, %v291
    %v293 = vpop.f32.mrb[0].mxu0
    %v294 = vadd.f32 0.0, %v293
    %v295 = vpop.f32.mrb[0].mxu0
    %v296 = vadd.f32 0.0, %v295
    %297 = vmatprep.mubr.bf16.mxu0 0
    %298 = vmatmul.mubr.bf16.gmra.mrb[0].mxu0 %v122
    %v299 = vpop.f32.mrb[0].mxu0
    %v300 = vadd.f32 0.0, %v299
    %v301 = vpop.f32.mrb[0].mxu0
    %v302 = vadd.f32 0.0, %v301
    %v303 = vpop.f32.mrb[0].mxu0
    %v304 = vadd.f32 0.0, %v303
    %v305 = vpop.f32.mrb[0].mxu0
    %v306 = vadd.f32 0.0, %v305
    %307 = vmatprep.mubr.bf16.mxu0 0
    %308 = vmatmul.mubr.bf16.gmra.mrb[0].mxu0 %v125
    %v309 = vpop.f32.mrb[0].mxu0
    %v310 = vadd.f32 0.0, %v309
    %v311 = vpop.f32.mrb[0].mxu0
    %v312 = vadd.f32 0.0, %v311
    %v313 = vpop.f32.mrb[0].mxu0
    %v314 = vadd.f32 0.0, %v313
    %v315 = vpop.f32.mrb[0].mxu0
    %v316 = vadd.f32 0.0, %v315
    %317 = vmatprep.mubr.bf16.mxu0 0
    %318 = vmatmul.mubr.bf16.gmra.mrb[0].mxu0 %v128
    %v319 = vpop.f32.mrb[0].mxu0
    %v320 = vadd.f32 0.0, %v319
    %v321 = vpop.f32.mrb[0].mxu0
    %v322 = vadd.f32 0.0, %v321
    %v323 = vpop.f32.mrb[0].mxu0
    %v324 = vadd.f32 0.0, %v323
    %v325 = vpop.f32.mrb[0].mxu0
    %v326 = vadd.f32 0.0, %v325
    %327 = vmatprep.mubr.bf16.mxu0 0
    %328 = vmatmul.mubr.bf16.gmra.mrb[0].mxu0 %v131
    %v329 = vpop.f32.mrb[0].mxu0
    %v330 = vadd.f32 0.0, %v329
    %v331 = vpop.f32.mrb[0].mxu0
    %v332 = vadd.f32 0.0, %v331
    %v333 = vpop.f32.mrb[0].mxu0
    %v334 = vadd.f32 0.0, %v333
    %v335 = vpop.f32.mrb[0].mxu0
    %v336 = vadd.f32 0.0, %v335
    %337 = vmatprep.mubr.bf16.mxu0 0
    %338 = vmatmul.mubr.bf16.gmra.mrb[0].mxu0 %v134
    %v339 = vpop.f32.mrb[0].mxu0
    %v340 = vadd.f32 0.0, %v339
    %v341 = vpop.f32.mrb[0].mxu0
    %v342 = vadd.f32 0.0, %v341
    %v343 = vpop.f32.mrb[0].mxu0
    %v344 = vadd.f32 0.0, %v343
    %v345 = vpop.f32.mrb[0].mxu0
    %v346 = vadd.f32 0.0, %v345
    %347 = vmatprep.mubr.bf16.mxu0 0
    %348 = vmatmul.mubr.bf16.gmra.mrb[0].mxu0 %v137
    %v349 = vpop.f32.mrb[0].mxu0
    %v350 = vadd.f32 0.0, %v349
    %v351 = vpop.f32.mrb[0].mxu0
    %v352 = vadd.f32 0.0, %v351
    %v353 = vpop.f32.mrb[0].mxu0
    %v354 = vadd.f32 0.0, %v353
    %v355 = vpop.f32.mrb[0].mxu0
    %v356 = vadd.f32 0.0, %v355
    %357 = vmatprep.mubr.bf16.mxu0 0
    %358 = vmatmul.mubr.bf16.gmra.mrb[0].mxu0 %v140
    %v359 = vpop.f32.mrb[0].mxu0
    %v360 = vadd.f32 0.0, %v359
    %v361 = vpop.f32.mrb[0].mxu0
    %v362 = vadd.f32 0.0, %v361
    %v363 = vpop.f32.mrb[0].mxu0
    %v364 = vadd.f32 0.0, %v363
    %v365 = vpop.f32.mrb[0].mxu0
    %v366 = vadd.f32 0.0, %v365
    %367 = vdwg.mxu0
    %v368 = vpack.c.bf16 %v181, %v177
    %v369 = vpack.c.bf16 %v183, %v179
    %v370 = vpack.c.bf16 %v294, %v290
    %v371 = vpack.c.bf16 %v296, %v292
    %v372 = vpack.c.bf16 %v191, %v187
    %v373 = vpack.c.bf16 %v193, %v189
    %v374 = vpack.c.bf16 %v304, %v300
    %v375 = vpack.c.bf16 %v306, %v302
    %v376 = vpack.c.bf16 %v201, %v197
    %v377 = vpack.c.bf16 %v203, %v199
    %v378 = vpack.c.bf16 %v314, %v310
    %v379 = vpack.c.bf16 %v316, %v312
    %v380 = vpack.c.bf16 %v211, %v207
    %v381 = vpack.c.bf16 %v213, %v209
    %v382 = vpack.c.bf16 %v324, %v320
    %v383 = vpack.c.bf16 %v326, %v322
    %v384 = vpack.c.bf16 %v221, %v217
    %v385 = vpack.c.bf16 %v223, %v219
    %v386 = vpack.c.bf16 %v334, %v330
    %v387 = vpack.c.bf16 %v336, %v332
    %v388 = vpack.c.bf16 %v231, %v227
    %v389 = vpack.c.bf16 %v233, %v229
    %v390 = vpack.c.bf16 %v344, %v340
    %v391 = vpack.c.bf16 %v346, %v342
    %v392 = vpack.c.bf16 %v241, %v237
    %v393 = vpack.c.bf16 %v243, %v239
    %v394 = vpack.c.bf16 %v354, %v350
    %v395 = vpack.c.bf16 %v356, %v352
    %v396 = vpack.c.bf16 %v251, %v247
    %v397 = vpack.c.bf16 %v253, %v249
    %v398 = vpack.c.bf16 %v364, %v360
    %v399 = vpack.c.bf16 %v366, %v362
    %v432 = vunpack.c.l.b16 %v368
    %v433 = vunpack.c.l.b16 %v369
    %v434 = vunpack.c.l.b16 %v370
    %v435 = vunpack.c.l.b16 %v371
    %v436 = vunpack.c.h.b16 %v368
    %v437 = vunpack.c.h.b16 %v369
    %v438 = vunpack.c.h.b16 %v370
    %v439 = vunpack.c.h.b16 %v371
    %v440 = vunpack.c.l.b16 %v372
    %v441 = vunpack.c.l.b16 %v373
    %v442 = vunpack.c.l.b16 %v374
    %v443 = vunpack.c.l.b16 %v375
    %v444 = vunpack.c.h.b16 %v372
    %v445 = vunpack.c.h.b16 %v373
    %v446 = vunpack.c.h.b16 %v374
    %v447 = vunpack.c.h.b16 %v375
    %v448 = vunpack.c.l.b16 %v376
    %v449 = vunpack.c.l.b16 %v377
    %v450 = vunpack.c.l.b16 %v378
    %v451 = vunpack.c.l.b16 %v379
    %v452 = vunpack.c.h.b16 %v376
    %v453 = vunpack.c.h.b16 %v377
    %v454 = vunpack.c.h.b16 %v378
    %v455 = vunpack.c.h.b16 %v379
    %v456 = vunpack.c.l.b16 %v380
    %v457 = vunpack.c.l.b16 %v381
    %v458 = vunpack.c.l.b16 %v382
    %v459 = vunpack.c.l.b16 %v383
    %v460 = vunpack.c.h.b16 %v380
    %v461 = vunpack.c.h.b16 %v381
    %v462 = vunpack.c.h.b16 %v382
    %v463 = vunpack.c.h.b16 %v383
    %v464 = vunpack.c.l.b16 %v384
    %v465 = vunpack.c.l.b16 %v385
    %v466 = vunpack.c.l.b16 %v386
    %v467 = vunpack.c.l.b16 %v387
    %v468 = vunpack.c.h.b16 %v384
    %v469 = vunpack.c.h.b16 %v385
    %v470 = vunpack.c.h.b16 %v386
    %v471 = vunpack.c.h.b16 %v387
    %v472 = vunpack.c.l.b16 %v388
    %v473 = vunpack.c.l.b16 %v389
    %v474 = vunpack.c.l.b16 %v390
    %v475 = vunpack.c.l.b16 %v391
    %v476 = vunpack.c.h.b16 %v388
    %v477 = vunpack.c.h.b16 %v389
    %v478 = vunpack.c.h.b16 %v390
    %v479 = vunpack.c.h.b16 %v391
    %v480 = vunpack.c.l.b16 %v392
    %v481 = vunpack.c.l.b16 %v393
    %v482 = vunpack.c.l.b16 %v394
    %v483 = vunpack.c.l.b16 %v395
    %v484 = vunpack.c.h.b16 %v392
    %v485 = vunpack.c.h.b16 %v393
    %v486 = vunpack.c.h.b16 %v394
    %v487 = vunpack.c.h.b16 %v395
    %v488 = vunpack.c.l.b16 %v396
    %v489 = vunpack.c.l.b16 %v397
    %v490 = vunpack.c.l.b16 %v398
    %v491 = vunpack.c.l.b16 %v399
    %v492 = vunpack.c.h.b16 %v396
    %v493 = vunpack.c.h.b16 %v397
    %v494 = vunpack.c.h.b16 %v398
    %v495 = vunpack.c.h.b16 %v399
    %v496 = vpack.c.b16 %v433, %v432
    %v497 = vpack.c.b16 %v435, %v434
    %v498 = vpack.c.b16 %v437, %v436
    %v499 = vpack.c.b16 %v439, %v438
    %v500 = vpack.c.b16 %v441, %v440
    %v501 = vpack.c.b16 %v443, %v442
    %v502 = vpack.c.b16 %v445, %v444
    %v503 = vpack.c.b16 %v447, %v446
    %v504 = vpack.c.b16 %v449, %v448
    %v505 = vpack.c.b16 %v451, %v450
    %v506 = vpack.c.b16 %v453, %v452
    %v507 = vpack.c.b16 %v455, %v454
    %v508 = vpack.c.b16 %v457, %v456
    %v509 = vpack.c.b16 %v459, %v458
    %v510 = vpack.c.b16 %v461, %v460
    %v511 = vpack.c.b16 %v463, %v462
    %v512 = vpack.c.b16 %v465, %v464
    %v513 = vpack.c.b16 %v467, %v466
    %v514 = vpack.c.b16 %v469, %v468
    %v515 = vpack.c.b16 %v471, %v470
    %v516 = vpack.c.b16 %v473, %v472
    %v517 = vpack.c.b16 %v475, %v474
    %v518 = vpack.c.b16 %v477, %v476
    %v519 = vpack.c.b16 %v479, %v478
    %v520 = vpack.c.b16 %v481, %v480
    %v521 = vpack.c.b16 %v483, %v482
    %v522 = vpack.c.b16 %v485, %v484
    %v523 = vpack.c.b16 %v487, %v486
    %v524 = vpack.c.b16 %v489, %v488
    %v525 = vpack.c.b16 %v491, %v490
    %v526 = vpack.c.b16 %v493, %v492
    %v527 = vpack.c.b16 %v495, %v494
    %560 = vst [vmem:[#allocation2] sm:$0xff] %v496
    %561 = vst [vmem:[#allocation2 + $0x8] sm:$0xff] %v497
    %562 = vst [vmem:[#allocation2 + $0x10] sm:$0xff] %v498
    %563 = vst [vmem:[#allocation2 + $0x18] sm:$0xff] %v499
    %564 = vst [vmem:[#allocation2 + $0x20] sm:$0xff] %v500
    %565 = vst [vmem:[#allocation2 + $0x28] sm:$0xff] %v501
    %566 = vst [vmem:[#allocation2 + $0x30] sm:$0xff] %v502
    %567 = vst [vmem:[#allocation2 + $0x38] sm:$0xff] %v503
    %568 = vst [vmem:[#allocation2 + $0x40] sm:$0xff] %v504
    %569 = vst [vmem:[#allocation2 + $0x48] sm:$0xff] %v505
    %570 = vst [vmem:[#allocation2 + $0x50] sm:$0xff] %v506
    %571 = vst [vmem:[#allocation2 + $0x58] sm:$0xff] %v507
    %572 = vst [vmem:[#allocation2 + $0x60] sm:$0xff] %v508
    %573 = vst [vmem:[#allocation2 + $0x68] sm:$0xff] %v509
    %574 = vst [vmem:[#allocation2 + $0x70] sm:$0xff] %v510
    %575 = vst [vmem:[#allocation2 + $0x78] sm:$0xff] %v511
    %576 = vst [vmem:[#allocation2 + $0x80] sm:$0xff] %v512
    %577 = vst [vmem:[#allocation2 + $0x88] sm:$0xff] %v513
    %578 = vst [vmem:[#allocation2 + $0x90] sm:$0xff] %v514
    %579 = vst [vmem:[#allocation2 + $0x98] sm:$0xff] %v515
    %580 = vst [vmem:[#allocation2 + $0xa0] sm:$0xff] %v516
    %581 = vst [vmem:[#allocation2 + $0xa8] sm:$0xff] %v517
    %582 = vst [vmem:[#allocation2 + $0xb0] sm:$0xff] %v518
    %583 = vst [vmem:[#allocation2 + $0xb8] sm:$0xff] %v519
    %584 = vst [vmem:[#allocation2 + $0xc0] sm:$0xff] %v520
    %585 = vst [vmem:[#allocation2 + $0xc8] sm:$0xff] %v521
    %586 = vst [vmem:[#allocation2 + $0xd0] sm:$0xff] %v522
    %587 = vst [vmem:[#allocation2 + $0xd8] sm:$0xff] %v523
    %588 = vst [vmem:[#allocation2 + $0xe0] sm:$0xff] %v524
    %589 = vst [vmem:[#allocation2 + $0xe8] sm:$0xff] %v525
    %590 = vst [vmem:[#allocation2 + $0xf0] sm:$0xff] %v526
    %591 = vst [vmem:[#allocation2 + $0xf8] sm:$0xff] %v527
    // Predicated region
    $region10: #{tpu_custom_call.1} parent=1 // pred_check
      _
    $region11: #{tpu_custom_call.1} parent=1 // pred_check_branch
      %593 = sbr.rel (0) target = $region13
    $region12: #{tpu_custom_call.1} parent=1 // pred_region
      %s595 = ssub.s32 4096, 4096
      %596 = vsyncadd [#allocation3], %s595
      %s597 = sshll.u32 [#allocation2], 4
      %s598 = int_to_ptr.vmem [resolvable:$true] %s597
      %603 = dma.vmem_to_hbm [thread:$0]  %s598, 4096, %s2, [#allocation3], 256, 256, 16
    $region13: #{tpu_custom_call.1} parent=1 // pred_fallthru
      _
    // Predicated region
    $region14: #{tpu_custom_call.1} parent=1 // pred_check
      _
    $region15: #{tpu_custom_call.1} parent=1 // pred_check_branch
      %605 = sbr.rel (0) target = $region17
    $region16: #{tpu_custom_call.1} parent=1 // pred_region
      %606 = dma.done [#allocation3], 4096
    $region17: #{tpu_custom_call.1} parent=1 // pred_fallthru
      _
    %607 = vsyncpa [#allocation3], 1

</llo_original>
